<compile_context>
chip_gen: v7x
topology: tpu7x:2x2x1
jax: 0.10.0
libtpu: 0.0.40
codegen_flags: <defaults>
</compile_context>

<pallas_src>
import functools

import jax
import jax.numpy as jnp
from jax.experimental import pallas as pl
from jax.experimental.pallas import tpu as pltpu

DIM1 = 64            # dim_size1 (fc1 output width / BatchNorm1d width)
BN_EPS = 1e-5
FUSED_MAX_B = 1024   # single-tile fused path for batches up to this size
FUSED_VMEM_BUDGET = 24 * 1024 * 1024   # conservative (v7x default scoped = 32 MiB)
TILED_VMEM_BUDGET = 12 * 1024 * 1024   # conservative (v5e default scoped = 16 MiB)


def _round_up(x, m):
    return (x + m - 1) // m * m


# ----------------------------------------------------------------- kernels ---

def fused_kernel(x_ref, w1_ref, b1_ref, gamma_ref, beta_ref, w2_ref, b2_ref,
                 out_ref, *, batch):
    """Whole forward in one VMEM-resident pass (entire batch in one tile)."""
    h = jnp.dot(x_ref[...], w1_ref[...],
                preferred_element_type=jnp.float32) + b1_ref[...]
    h = jnp.maximum(h, 0.0)                                      # (B, 64)

    inv_b = 1.0 / batch
    mean = jnp.sum(h, axis=0, keepdims=True) * inv_b             # (1, 64)
    d = h - mean
    var = jnp.sum(d * d, axis=0, keepdims=True) * inv_b          # biased (training BN)
    inv_std = jax.lax.rsqrt(var + BN_EPS)
    scale = gamma_ref[...] * inv_std                             # (1, 64)
    shift = beta_ref[...] - scale * mean                         # (1, 64)

    hn = h * scale + shift
    out_ref[...] = jnp.dot(hn, w2_ref[...],
                           preferred_element_type=jnp.float32) + b2_ref[...]


def fc1_stats_kernel(x_ref, w1_ref, b1_ref, stats_ref, *, batch, tb):
    """fc1 + relu; masked per-tile [sum | sumsq] packed into one (8,128) block."""
    h = jnp.dot(x_ref[...], w1_ref[...],
                preferred_element_type=jnp.float32) + b1_ref[...]
    h = jnp.maximum(h, 0.0)                                      # (tb, 64)

    # Mask rows >= batch (covers the padded/garbage rows of a partial block).
    row = pl.program_id(0) * tb + jax.lax.broadcasted_iota(jnp.int32, (tb, 1), 0)
    hm = jnp.where(row < batch, h, 0.0)

    s = jnp.sum(hm, axis=0, keepdims=True)                       # (1, 64)
    sq = jnp.sum(hm * hm, axis=0, keepdims=True)                 # (1, 64)
    packed = jnp.concatenate([s, sq], axis=-1)                   # (1, 128) lane-dense
    stats_ref[...] = jnp.broadcast_to(packed, (8, 2 * DIM1))     # unmasked (8,128) store


def bn_fc2_recompute_kernel(x_ref, w1_ref, b1_ref, scale_ref, shift_ref,
                            w2_ref, b2_ref, out_ref):
    """Recompute fc1+relu (no h HBM round-trip), apply BN affine, fc2."""
    h = jnp.dot(x_ref[...], w1_ref[...],
                preferred_element_type=jnp.float32) + b1_ref[...]
    h = jnp.maximum(h, 0.0)
    hn = h * scale_ref[...] + shift_ref[...]
    out_ref[...] = jnp.dot(hn, w2_ref[...],
                           preferred_element_type=jnp.float32) + b2_ref[...]


# ----------------------------------------------------------------- wrapper ---

def _pick_tb(batch, f, nout_pad):
    """Largest batch tile that keeps double-buffered VMEM under a safe budget."""
    tb = 2048
    while tb > 128:
        need = 4 * (2 * tb * f + 2 * tb * nout_pad) \
             + 4 * (f * DIM1 + DIM1 * nout_pad + 4 * DIM1 + nout_pad)
        if need <= TILED_VMEM_BUDGET:
            break
        tb //= 2
    tb = max(tb, 128)
    # v7x megacore: keep at least two grid tiles so both TensorCores get work.
    tb = min(tb, _round_up(pl.cdiv(batch, 2), 8))
    return max(tb, 8)


def _fused_forward(x, kp, nout_pad):
    B, F = x.shape
    return pl.pallas_call(
        functools.partial(fused_kernel, batch=B),
        out_shape=jax.ShapeDtypeStruct((B, nout_pad), jnp.float32),
        grid=(1,),
        in_specs=[pl.BlockSpec((B, F), lambda i: (0, 0)),
                  pl.BlockSpec((F, DIM1), lambda i: (0, 0)),
                  pl.BlockSpec((1, DIM1), lambda i: (0, 0)),
                  pl.BlockSpec((1, DIM1), lambda i: (0, 0)),
                  pl.BlockSpec((1, DIM1), lambda i: (0, 0)),
                  pl.BlockSpec((DIM1, nout_pad), lambda i: (0, 0)),
                  pl.BlockSpec((1, nout_pad), lambda i: (0, 0))],
        out_specs=pl.BlockSpec((B, nout_pad), lambda i: (0, 0)),
        compiler_params=pltpu.CompilerParams(
            dimension_semantics=("arbitrary",)),
    )(x, kp["w1"], kp["b1"], kp["gamma2d"], kp["beta2d"], kp["w2"], kp["b2"])


def _tiled_forward(x, kp, nout_pad):
    B, F = x.shape
    tb = _pick_tb(B, F, nout_pad)
    nb = pl.cdiv(B, tb)
    mcore = pltpu.CompilerParams(dimension_semantics=("parallel",))

    # ---- pass 1: fc1 + relu + lane-dense per-tile BN partial statistics ------
    stats = pl.pallas_call(
        functools.partial(fc1_stats_kernel, batch=B, tb=tb),
        out_shape=jax.ShapeDtypeStruct((nb * 8, 2 * DIM1), jnp.float32),
        grid=(nb,),
        in_specs=[pl.BlockSpec((tb, F), lambda i: (i, 0)),
                  pl.BlockSpec((F, DIM1), lambda i: (0, 0)),
                  pl.BlockSpec((1, DIM1), lambda i: (0, 0))],
        out_specs=pl.BlockSpec((8, 2 * DIM1), lambda i: (i, 0)),
        compiler_params=mcore,
    )(x, kp["w1"], kp["b1"])

    # ---- tiny host-side fold of the nb per-tile partials -> BN scale/shift ---
    st = stats.reshape(nb, 8, 2 * DIM1)[:, 0, :]                 # (nb, 128)
    tot = jnp.sum(st, axis=0)                                    # (128,)
    mean = tot[:DIM1] / B
    var = jnp.maximum(tot[DIM1:] / B - mean * mean, 0.0)         # biased (training BN)
    inv_std = jax.lax.rsqrt(var + BN_EPS)
    gamma = kp["gamma2d"][0]
    beta = kp["beta2d"][0]
    scale = (gamma * inv_std).reshape(1, DIM1)
    shift = (beta - gamma * inv_std * mean).reshape(1, DIM1)

    # ---- pass 2: recompute fc1+relu, BN affine, fc2 (lane-dense slab) --------
    return pl.pallas_call(
        bn_fc2_recompute_kernel,
        out_shape=jax.ShapeDtypeStruct((B, nout_pad), jnp.float32),
        grid=(nb,),
        in_specs=[pl.BlockSpec((tb, F), lambda i: (i, 0)),
                  pl.BlockSpec((F, DIM1), lambda i: (0, 0)),
                  pl.BlockSpec((1, DIM1), lambda i: (0, 0)),
                  pl.BlockSpec((1, DIM1), lambda i: (0, 0)),
                  pl.BlockSpec((1, DIM1), lambda i: (0, 0)),
                  pl.BlockSpec((DIM1, nout_pad), lambda i: (0, 0)),
                  pl.BlockSpec((1, nout_pad), lambda i: (0, 0))],
        out_specs=pl.BlockSpec((tb, nout_pad), lambda i: (i, 0)),
        compiler_params=mcore,
    )(x, kp["w1"], kp["b1"], scale, shift, kp["w2"], kp["b2"])


def combined_layer_forward(x, kparams, *, nclass):
    """Forward pass.  Returns (B, nclass); downstream consumers that can take
    the lane-padded (B, nout_pad) slab directly should use the internal paths
    to avoid the trailing column slice."""
    B, F = x.shape
    x = x.astype(jnp.float32)
    nout_pad = kparams["w2"].shape[1]

    fused_bytes = 4 * (B * F + 2 * B * DIM1 + B * nout_pad
                       + F * DIM1 + DIM1 * nout_pad + 4 * DIM1 + nout_pad)
    if B <= FUSED_MAX_B and fused_bytes <= FUSED_VMEM_BUDGET:
        out = _fused_forward(x, kparams, nout_pad)
    else:
        out = _tiled_forward(x, kparams, nout_pad)
    return out[:, :nclass]


# ------------------------------------------------------------------ params ---

def init_raw_params(key, *, input_size, nclass):
    """Deterministic synthetic parameters with the PyTorch shapes."""
    ks = jax.random.split(key, 6)
    return {
        "fc1_W": 0.2 * jax.random.normal(ks[0], (DIM1, input_size), jnp.float32),
        "fc1_b": 0.1 * jax.random.normal(ks[1], (DIM1,), jnp.float32),
        "gamma": 1.0 + 0.1 * jax.random.normal(ks[2], (DIM1,), jnp.float32),
        "beta": 0.1 * jax.random.normal(ks[3], (DIM1,), jnp.float32),
        "fc2_W": 0.2 * jax.random.normal(ks[4], (nclass, DIM1), jnp.float32),
        "fc2_b": 0.1 * jax.random.normal(ks[5], (nclass,), jnp.float32),
    }


def to_kernel_params(raw):
    """Rearrange PyTorch-shaped params into kernel-friendly, lane-dense layouts."""
    nclass = raw["fc2_W"].shape[0]
    nout_pad = _round_up(nclass, 128)
    w2 = jnp.zeros((DIM1, nout_pad), jnp.float32).at[:, :nclass].set(raw["fc2_W"].T)
    b2 = jnp.zeros((1, nout_pad), jnp.float32).at[0, :nclass].set(raw["fc2_b"])
    return {
        "w1": raw["fc1_W"].T.astype(jnp.float32),        # (input_size, 64)
        "b1": raw["fc1_b"].reshape(1, DIM1),             # (1, 64)
        "gamma2d": raw["gamma"].reshape(1, DIM1),        # (1, 64)
        "beta2d": raw["beta"].reshape(1, DIM1),          # (1, 64)
        "w2": w2,                                        # (64, nout_pad) lane-padded
        "b2": b2,                                        # (1, nout_pad)  lane-padded
    }


def combined_layer_reference(x, raw):
    """Pure-JAX reference mirroring the PyTorch forward (training-mode BN)."""
    h = jnp.maximum(x @ raw["fc1_W"].T + raw["fc1_b"], 0.0)
    mean = jnp.mean(h, axis=0)
    var = jnp.mean((h - mean) ** 2, axis=0)              # biased (training BN)
    hn = (h - mean) * jax.lax.rsqrt(var + BN_EPS) * raw["gamma"] + raw["beta"]
    return hn @ raw["fc2_W"].T + raw["fc2_b"]


if __name__ == "__main__":
    key = jax.random.PRNGKey(0)
    k_param, k_in, k_in2 = jax.random.split(key, 3)

    # --- small-batch demo (fused single-kernel path) ---------------------------
    B, INPUT_SIZE, NCLASS = 6, 32, 2
    x = jax.random.normal(k_in, (B, INPUT_SIZE), jnp.float32)

    raw = init_raw_params(k_param, input_size=INPUT_SIZE, nclass=NCLASS)
    kparams = to_kernel_params(raw)

    out = combined_layer_forward(x, kparams, nclass=NCLASS)
    out = jax.block_until_ready(out)
    ref = combined_layer_reference(x, raw)
    assert out.shape == (B, NCLASS)
    err = float(jnp.max(jnp.abs(out - ref)))
    assert err < 1e-3, f"fused-path mismatch: max|err| = {err}"

    # --- large-batch check (two-pass tiled path, no h round-trip) --------------
    B2 = 1500
    x2 = jax.random.normal(k_in2, (B2, INPUT_SIZE), jnp.float32)
    out2 = combined_layer_forward(x2, kparams, nclass=NCLASS)
    out2 = jax.block_until_ready(out2)
    ref2 = combined_layer_reference(x2, raw)
    assert out2.shape == (B2, NCLASS)
    err2 = float(jnp.max(jnp.abs(out2 - ref2)))
    assert err2 < 1e-3, f"tiled-path mismatch: max|err| = {err2}"

    print("KERNEL_OK")
</pallas_src>

<mosaic_0001>
module attributes {stable_mosaic.version = 11 : i64} {
  func.func @fused_kernel(%arg0: i32, %arg1: memref<6x32xf32, #tpu.memory_space<vmem>>, %arg2: memref<32x64xf32, #tpu.memory_space<vmem>>, %arg3: memref<1x64xf32, #tpu.memory_space<vmem>>, %arg4: memref<1x64xf32, #tpu.memory_space<vmem>>, %arg5: memref<1x64xf32, #tpu.memory_space<vmem>>, %arg6: memref<64x128xf32, #tpu.memory_space<vmem>>, %arg7: memref<1x128xf32, #tpu.memory_space<vmem>>, %arg8: memref<6x128xf32, #tpu.memory_space<vmem>>) attributes {dimension_semantics = [#tpu.dimension_semantics<arbitrary>], iteration_bounds = array<i64: 1>, scalar_prefetch = 0 : i64, scratch_operands = 0 : i64, tpu.core_type = #tpu.core_type<tc>, window_params = [{pipeline_mode = #tpu.pipeline_mode<synchronous>, transform_indices = @transform_0, window_bounds = array<i64: 6, 32>}, {pipeline_mode = #tpu.pipeline_mode<synchronous>, transform_indices = @transform_1, window_bounds = array<i64: 32, 64>}, {pipeline_mode = #tpu.pipeline_mode<synchronous>, transform_indices = @transform_2, window_bounds = array<i64: 1, 64>}, {pipeline_mode = #tpu.pipeline_mode<synchronous>, transform_indices = @transform_3, window_bounds = array<i64: 1, 64>}, {pipeline_mode = #tpu.pipeline_mode<synchronous>, transform_indices = @transform_4, window_bounds = array<i64: 1, 64>}, {pipeline_mode = #tpu.pipeline_mode<synchronous>, transform_indices = @transform_5, window_bounds = array<i64: 64, 128>}, {pipeline_mode = #tpu.pipeline_mode<synchronous>, transform_indices = @transform_6, window_bounds = array<i64: 1, 128>}, {pipeline_mode = #tpu.pipeline_mode<synchronous>, transform_indices = @transform_7, window_bounds = array<i64: 6, 128>}]} {
    %c0 = arith.constant 0 : index
    %c0_0 = arith.constant 0 : index
    %0 = vector.load %arg1[%c0, %c0_0] : memref<6x32xf32, #tpu.memory_space<vmem>>, vector<6x32xf32>
    %c0_1 = arith.constant 0 : index
    %c0_2 = arith.constant 0 : index
    %1 = vector.load %arg2[%c0_1, %c0_2] : memref<32x64xf32, #tpu.memory_space<vmem>>, vector<32x64xf32>
    %cst = arith.constant dense<0.000000e+00> : vector<6x64xf32>
    %2 = tpu.matmul %0, %1, %cst {dimension_numbers = #tpu.dot_dimension_numbers<[1], [0], [0], [1], [0, 0, 1, 1], [], []>} : vector<6x32xf32>, vector<32x64xf32>, vector<6x64xf32> -> vector<6x64xf32>
    %c0_3 = arith.constant 0 : index
    %c0_4 = arith.constant 0 : index
    %3 = vector.load %arg3[%c0_3, %c0_4] : memref<1x64xf32, #tpu.memory_space<vmem>>, vector<1x64xf32>
    %4 = vector.broadcast %3 : vector<1x64xf32> to vector<6x64xf32>
    %5 = arith.addf %2, %4 : vector<6x64xf32>
    %cst_5 = arith.constant 0.000000e+00 : f32
    %6 = vector.broadcast %cst_5 : f32 to vector<6x64xf32>
    %7 = arith.maximumf %5, %6 : vector<6x64xf32>
    %cst_6 = arith.constant dense<0.000000e+00> : vector<64xf32>
    %8 = vector.multi_reduction <add>, %7, %cst_6 [0] : vector<6x64xf32> to vector<64xf32>
    %9 = vector.shape_cast %8 : vector<64xf32> to vector<1x64xf32>
    %cst_7 = arith.constant 0.166666672 : f32
    %10 = vector.broadcast %cst_7 : f32 to vector<1x64xf32>
    %11 = arith.mulf %9, %10 : vector<1x64xf32>
    %12 = vector.broadcast %11 : vector<1x64xf32> to vector<6x64xf32>
    %13 = arith.subf %7, %12 : vector<6x64xf32>
    %14 = arith.mulf %13, %13 : vector<6x64xf32>
    %cst_8 = arith.constant dense<0.000000e+00> : vector<64xf32>
    %15 = vector.multi_reduction <add>, %14, %cst_8 [0] : vector<6x64xf32> to vector<64xf32>
    %16 = vector.shape_cast %15 : vector<64xf32> to vector<1x64xf32>
    %cst_9 = arith.constant 0.166666672 : f32
    %17 = vector.broadcast %cst_9 : f32 to vector<1x64xf32>
    %18 = arith.mulf %16, %17 : vector<1x64xf32>
    %cst_10 = arith.constant 9.99999974E-6 : f32
    %19 = vector.broadcast %cst_10 : f32 to vector<1x64xf32>
    %20 = arith.addf %18, %19 : vector<1x64xf32>
    %21 = math.rsqrt %20 : vector<1x64xf32>
    %c0_11 = arith.constant 0 : index
    %c0_12 = arith.constant 0 : index
    %22 = vector.load %arg4[%c0_11, %c0_12] : memref<1x64xf32, #tpu.memory_space<vmem>>, vector<1x64xf32>
    %23 = arith.mulf %22, %21 : vector<1x64xf32>
    %c0_13 = arith.constant 0 : index
    %c0_14 = arith.constant 0 : index
    %24 = vector.load %arg5[%c0_13, %c0_14] : memref<1x64xf32, #tpu.memory_space<vmem>>, vector<1x64xf32>
    %25 = arith.mulf %23, %11 : vector<1x64xf32>
    %26 = arith.subf %24, %25 : vector<1x64xf32>
    %27 = vector.broadcast %23 : vector<1x64xf32> to vector<6x64xf32>
    %28 = arith.mulf %7, %27 : vector<6x64xf32>
    %29 = vector.broadcast %26 : vector<1x64xf32> to vector<6x64xf32>
    %30 = arith.addf %28, %29 : vector<6x64xf32>
    %c0_15 = arith.constant 0 : index
    %c0_16 = arith.constant 0 : index
    %31 = vector.load %arg6[%c0_15, %c0_16] : memref<64x128xf32, #tpu.memory_space<vmem>>, vector<64x128xf32>
    %cst_17 = arith.constant dense<0.000000e+00> : vector<6x128xf32>
    %32 = tpu.matmul %30, %31, %cst_17 {dimension_numbers = #tpu.dot_dimension_numbers<[1], [0], [0], [1], [0, 0, 1, 1], [], []>} : vector<6x64xf32>, vector<64x128xf32>, vector<6x128xf32> -> vector<6x128xf32>
    %c0_18 = arith.constant 0 : index
    %c0_19 = arith.constant 0 : index
    %33 = vector.load %arg7[%c0_18, %c0_19] : memref<1x128xf32, #tpu.memory_space<vmem>>, vector<1x128xf32>
    %34 = vector.broadcast %33 : vector<1x128xf32> to vector<6x128xf32>
    %35 = arith.addf %32, %34 : vector<6x128xf32>
    %c0_20 = arith.constant 0 : index
    %c0_21 = arith.constant 0 : index
    %36 = vector.load %arg8[%c0_20, %c0_21] : memref<6x128xf32, #tpu.memory_space<vmem>>, vector<6x128xf32>
    tpu.vector_store %arg8[%c0_20, %c0_21], %35 {strides = array<i32>} : memref<6x128xf32, #tpu.memory_space<vmem>>, vector<6x128xf32>,
    return
  }
  func.func @transform_0(%arg0: i32) -> (i32, i32) {
    %c0_i32 = arith.constant 0 : i32
    %c0_i32_0 = arith.constant 0 : i32
    %c0_i32_1 = arith.constant 0 : i32
    return %c0_i32, %c0_i32_0 : i32, i32
  }
  func.func @transform_1(%arg0: i32) -> (i32, i32) {
    %c0_i32 = arith.constant 0 : i32
    %c0_i32_0 = arith.constant 0 : i32
    %c0_i32_1 = arith.constant 0 : i32
    return %c0_i32, %c0_i32_0 : i32, i32
  }
  func.func @transform_2(%arg0: i32) -> (i32, i32) {
    %c0_i32 = arith.constant 0 : i32
    %c0_i32_0 = arith.constant 0 : i32
    %c0_i32_1 = arith.constant 0 : i32
    return %c0_i32, %c0_i32_0 : i32, i32
  }
  func.func @transform_3(%arg0: i32) -> (i32, i32) {
    %c0_i32 = arith.constant 0 : i32
    %c0_i32_0 = arith.constant 0 : i32
    %c0_i32_1 = arith.constant 0 : i32
    return %c0_i32, %c0_i32_0 : i32, i32
  }
  func.func @transform_4(%arg0: i32) -> (i32, i32) {
    %c0_i32 = arith.constant 0 : i32
    %c0_i32_0 = arith.constant 0 : i32
    %c0_i32_1 = arith.constant 0 : i32
    return %c0_i32, %c0_i32_0 : i32, i32
  }
  func.func @transform_5(%arg0: i32) -> (i32, i32) {
    %c0_i32 = arith.constant 0 : i32
    %c0_i32_0 = arith.constant 0 : i32
    %c0_i32_1 = arith.constant 0 : i32
    return %c0_i32, %c0_i32_0 : i32, i32
  }
  func.func @transform_6(%arg0: i32) -> (i32, i32) {
    %c0_i32 = arith.constant 0 : i32
    %c0_i32_0 = arith.constant 0 : i32
    %c0_i32_1 = arith.constant 0 : i32
    return %c0_i32, %c0_i32_0 : i32, i32
  }
  func.func @transform_7(%arg0: i32) -> (i32, i32) {
    %c0_i32 = arith.constant 0 : i32
    %c0_i32_0 = arith.constant 0 : i32
    %c0_i32_1 = arith.constant 0 : i32
    return %c0_i32, %c0_i32_0 : i32, i32
  }
}

</mosaic_0001>

<llo_original>
// kernel: tpu_custom_call.1
$region0: #{tpu_custom_call.1}
  #allocation0 [shape = 'u32[]', space=smem, size = 0x4, offset = 0x4, fixed_abs, tag = 'smem constant byte address 0x4 - core index']
  #allocation1 [shape = 'u32[144,128]{1,0:T(1,128)}', space=vmem, size = 0x12000, scoped, tag = 'internal scratch']
  %s0 = inlined_call_operand.hbm [shape: f32[6,32], index: 0, kind: input, shape index: {}]
  %s1 = inlined_call_operand.hbm [shape: f32[32,64], index: 1, kind: input, shape index: {}]
  %s2 = inlined_call_operand.vmem [shape: f32[1,64], index: 2, kind: input, shape index: {}]
  %s3 = inlined_call_operand.vmem [shape: f32[1,64], index: 3, kind: input, shape index: {}]
  %s4 = inlined_call_operand.vmem [shape: f32[1,64], index: 4, kind: input, shape index: {}]
  %s5 = inlined_call_operand.hbm [shape: f32[64,128], index: 5, kind: input, shape index: {}]
  %s6 = inlined_call_operand.vmem [shape: f32[1,128], index: 6, kind: input, shape index: {}]
  %s7 = inlined_call_operand.hbm [shape: f32[6,128], index: 7, kind: output, shape index: {}]
  %s8 = sld [smem:[#allocation0]]
  $region50: #{tpu_custom_call.1} parent=0
    _
  %s10 = ssub.s32 1, %s8
  %s11 = scalar_select 0, %s10, %s8
  $region1: #{tpu_custom_call.1} parent=0
    #allocation2 [shape = 'u8[4096]{0}', space=vmem, size = 0x1000, scoped, tag = 'input window, operand 0, single buffered']
    #allocation3 [shape = 's32[1]{0}', space=sflag, size = 0x4, scoped, tag = 'scoped memory for tpu_custom_call.1']
    #allocation4 [shape = 's32[1]{0}', space=sflag, size = 0x4, scoped, tag = 'scoped memory for tpu_custom_call.1']
    #allocation5 [shape = 'u8[16384]{0}', space=vmem, size = 0x4000, scoped, tag = 'input window, operand 1, single buffered']
    #allocation6 [shape = 's32[1]{0}', space=sflag, size = 0x4, scoped, tag = 'scoped memory for tpu_custom_call.1']
    #allocation7 [shape = 'u8[32768]{0}', space=vmem, size = 0x8000, scoped, tag = 'input window, operand 5, single buffered']
    #allocation8 [shape = 'u8[4096]{0}', space=vmem, size = 0x1000, scoped, tag = 'output window, operand 0, single buffered']
    %12 = vsyncpa [#allocation3], 0
    %13 = vsyncpa [#allocation6], 0
    %14 = vsyncpa [#allocation4], 0
    // Predicated region
    $region2: #{tpu_custom_call.1} parent=1 // pred_check
      _
    $region3: #{tpu_custom_call.1} parent=1 // pred_check_branch
      %16 = sbr.rel (0) target = $region5
    $region4: #{tpu_custom_call.1} parent=1 // pred_region
      %s18 = ssub.s32 128, 128
      %19 = vsyncadd [#allocation3], %s18
      %s21 = sshll.u32 [#allocation2], 4
      %s22 = int_to_ptr.vmem [resolvable:$true] %s21
      %24 = dma.hbm_to_vmem [thread:$0]  %s0, 128, %s22, [#allocation3]
    $region5: #{tpu_custom_call.1} parent=1 // pred_fallthru
      _
    // Predicated region
    $region6: #{tpu_custom_call.1} parent=1 // pred_check
      _
    $region7: #{tpu_custom_call.1} parent=1 // pred_check_branch
      %26 = sbr.rel (0) target = $region9
    $region8: #{tpu_custom_call.1} parent=1 // pred_region
      %s28 = ssub.s32 512, 512
      %29 = vsyncadd [#allocation6], %s28
      %s30 = sshll.u32 [#allocation5], 4
      %s31 = int_to_ptr.vmem [resolvable:$true] %s30
      %36 = dma.hbm_to_vmem [thread:$0]  %s1, 512, %s31, [#allocation6], 128, 128, 8
    $region9: #{tpu_custom_call.1} parent=1 // pred_fallthru
      _
    // Predicated region
    $region10: #{tpu_custom_call.1} parent=1 // pred_check
      _
    $region11: #{tpu_custom_call.1} parent=1 // pred_check_branch
      %38 = sbr.rel (0) target = $region13
    $region12: #{tpu_custom_call.1} parent=1 // pred_region
      _
    $region13: #{tpu_custom_call.1} parent=1 // pred_fallthru
      _
    // Predicated region
    $region14: #{tpu_custom_call.1} parent=1 // pred_check
      _
    $region15: #{tpu_custom_call.1} parent=1 // pred_check_branch
      %40 = sbr.rel (0) target = $region17
    $region16: #{tpu_custom_call.1} parent=1 // pred_region
      _
    $region17: #{tpu_custom_call.1} parent=1 // pred_fallthru
      _
    // Predicated region
    $region18: #{tpu_custom_call.1} parent=1 // pred_check
      _
    $region19: #{tpu_custom_call.1} parent=1 // pred_check_branch
      %42 = sbr.rel (0) target = $region21
    $region20: #{tpu_custom_call.1} parent=1 // pred_region
      _
    $region21: #{tpu_custom_call.1} parent=1 // pred_fallthru
      _
    // Predicated region
    $region22: #{tpu_custom_call.1} parent=1 // pred_check
      _
    $region23: #{tpu_custom_call.1} parent=1 // pred_check_branch
      %44 = sbr.rel (0) target = $region25
    $region24: #{tpu_custom_call.1} parent=1 // pred_region
      %s46 = ssub.s32 1024, 1024
      %47 = vsyncadd [#allocation6], %s46
      %s48 = sshll.u32 [#allocation7], 4
      %s49 = int_to_ptr.vmem [resolvable:$true] %s48
      %54 = dma.hbm_to_vmem [thread:$0]  %s5, 1024, %s49, [#allocation6], 128, 128, 8
    $region25: #{tpu_custom_call.1} parent=1 // pred_fallthru
      _
    // Predicated region
    $region26: #{tpu_custom_call.1} parent=1 // pred_check
      _
    $region27: #{tpu_custom_call.1} parent=1 // pred_check_branch
      %56 = sbr.rel (0) target = $region29
    $region28: #{tpu_custom_call.1} parent=1 // pred_region
      _
    $region29: #{tpu_custom_call.1} parent=1 // pred_fallthru
      _
    // Predicated region
    $region30: #{tpu_custom_call.1} parent=1 // pred_check
      _
    $region31: #{tpu_custom_call.1} parent=1 // pred_check_branch
      %58 = sbr.rel (0) target = $region33
    $region32: #{tpu_custom_call.1} parent=1 // pred_region
      %59 = dma.done [#allocation3], 128
    $region33: #{tpu_custom_call.1} parent=1 // pred_fallthru
      _
    // Predicated region
    $region34: #{tpu_custom_call.1} parent=1 // pred_check
      _
    $region35: #{tpu_custom_call.1} parent=1 // pred_check_branch
      %61 = sbr.rel (0) target = $region37
    $region36: #{tpu_custom_call.1} parent=1 // pred_region
      %62 = dma.done [#allocation6], 512
    $region37: #{tpu_custom_call.1} parent=1 // pred_fallthru
      _
    // Predicated region
    $region38: #{tpu_custom_call.1} parent=1 // pred_check
      _
    $region39: #{tpu_custom_call.1} parent=1 // pred_check_branch
      %64 = sbr.rel (0) target = $region41
    $region40: #{tpu_custom_call.1} parent=1 // pred_region
      %65 = dma.done [#allocation6], 1024
    $region41: #{tpu_custom_call.1} parent=1 // pred_fallthru
      _
    %v66 = vld [vmem:[#allocation2] sm:$0x3f]
    %v67 = vld [vmem:[#allocation5] sm:$0xff]
    %v68 = vld [vmem:[#allocation5 + $0x8] sm:$0xff]
    %v69 = vld [vmem:[#allocation5 + $0x10] sm:$0xff]
    %v70 = vld [vmem:[#allocation5 + $0x18] sm:$0xff]
    %v71 = vld [vmem:[%s2] sm:$0x1]
    %v73 = vlaneseq
    %v74 = vshrl.u32 %v73, 7
    %v75 = vsub.s32 0, %v74
    %v76 = vrot.slane %v71, %v75
    %vm78 = vcmask 261120
    %v80 = vsel %vm78, %v66, 0
    %82 = vmatprep.subr.mxu0 0.0
    %83 = vmatpush1.msra.mxu0 %v67
    %84 = vmatprep.subr.mxu0 0.0
    %85 = vmatpush1.msra.mxu0 %v68
    %86 = vmatprep.subr.mxu0 0.0
    %87 = vmatpush1.msra.mxu0 %v69
    %88 = vmatprep.subr.mxu0 0.0
    %89 = vmatpush1.msra.mxu0 %v70
    %90 = vmatprep.subr.mxu0 0.0
    %91 = vmatpush1.msra.mxu0 0.0
    %92 = vmatprep.subr.mxu0 0.0
    %93 = vmatpush1.msra.mxu0 0.0
    %94 = vmatprep.subr.mxu0 0.0
    %95 = vmatpush1.msra.mxu0 0.0
    %96 = vmatprep.subr.mxu0 0.0
    %97 = vmatpush1.msra.mxu0 0.0
    %98 = vmatprep.subr.mxu0 0.0
    %99 = vmatpush1.msra.mxu0 0.0
    %100 = vmatprep.subr.mxu0 0.0
    %101 = vmatpush1.msra.mxu0 0.0
    %102 = vmatprep.subr.mxu0 0.0
    %103 = vmatpush1.msra.mxu0 0.0
    %104 = vmatprep.subr.mxu0 0.0
    %105 = vmatpush1.msra.mxu0 0.0
    %106 = vmatprep.subr.mxu0 0.0
    %107 = vmatpush1.msra.mxu0 0.0
    %108 = vmatprep.subr.mxu0 0.0
    %109 = vmatpush1.msra.mxu0 0.0
    %110 = vmatprep.subr.mxu0 0.0
    %111 = vmatpush1.msra.mxu0 0.0
    %112 = vmatprep.subr.mxu0 0.0
    %113 = vmatpush1.msra.mxu0 0.0
    %114 = vmatprep.subr.mxu0 0.0
    %115 = vmatpush1.msra.mxu0 0.0
    %116 = vmatprep.subr.mxu0 0.0
    %117 = vmatpush1.msra.mxu0 0.0
    %118 = vmatprep.subr.mxu0 0.0
    %119 = vmatpush1.msra.mxu0 0.0
    %120 = vmatprep.subr.mxu0 0.0
    %121 = vmatpush1.msra.mxu0 0.0
    %122 = vmatprep.subr.mxu0 0.0
    %123 = vmatpush1.msra.mxu0 0.0
    %124 = vmatprep.subr.mxu0 0.0
    %125 = vmatpush1.msra.mxu0 0.0
    %126 = vmatprep.subr.mxu0 0.0
    %127 = vmatpush1.msra.mxu0 0.0
    %128 = vmatprep.subr.mxu0 0.0
    %129 = vmatpush1.msra.mxu0 0.0
    %130 = vmatprep.subr.mxu0 0.0
    %131 = vmatpush1.msra.mxu0 0.0
    %132 = vmatprep.subr.mxu0 0.0
    %133 = vmatpush1.msra.mxu0 0.0
    %134 = vmatprep.subr.mxu0 0.0
    %135 = vmatpush1.msra.mxu0 0.0
    %136 = vmatprep.subr.mxu0 0.0
    %137 = vmatpush1.msra.mxu0 0.0
    %138 = vmatprep.subr.mxu0 0.0
    %139 = vmatpush1.msra.mxu0 0.0
    %140 = vmatprep.subr.mxu0 0.0
    %141 = vmatpush1.msra.mxu0 0.0
    %142 = vmatprep.subr.mxu0 0.0
    %143 = vmatpush1.msra.mxu0 0.0
    %144 = vmatprep.subr.mxu0 0.0
    %145 = vmatpush1.msra.mxu0 0.0
    %146 = vmatprep.mubr.f32.mxu0 0.0
    %147 = vmatmul.mubr.f32.gmra.mrb[0].mxu0 %v80
    %v148 = vpop.f32.mrb[0].mxu0
    %v149 = vadd.f32 %v76, %v148
    %v150 = vpop.f32.mrb[0].mxu0
    %151 = vdwg.mxu0
    %v152 = vmax.f32 %v149, 0.0
    %vm153 = vcmask 521216
    %v154 = vsel %vm153, %v152, 0.0
    %v155 = vrot.slane %v154, 4
    %v156 = vadd.f32 %v154, %v155
    %v157 = vrot.slane %v156, 2
    %v158 = vadd.f32 %v156, %v157
    %v159 = vrot.slane %v158, 1
    %v160 = vadd.f32 %v158, %v159
    %v161 = vmul.f32 %v160, 0.16666667
    %v162 = vsub.f32 %v152, %v161
    %v163 = vmul.f32 %v162, %v162
    %v164 = vsel %vm153, %v163, 0.0
    %v165 = vrot.slane %v164, 4
    %v166 = vadd.f32 %v164, %v165
    %v167 = vrot.slane %v166, 2
    %v168 = vadd.f32 %v166, %v167
    %v169 = vrot.slane %v168, 1
    %v170 = vadd.f32 %v168, %v169
    %v171 = vmul.f32 %v170, 0.16666667
    %v172 = vadd.f32 %v171, 1e-05
    %v173 = vrsqrt.pop %v172
    %v174 = vld [vmem:[%s3] sm:$0x1]
    %v175 = vmul.f32 %v174, %v173
    %v176 = vld [vmem:[%s4] sm:$0x1]
    %v177 = vmul.f32 %v175, %v161
    %v178 = vsub.f32 %v176, %v177
    %v180 = vlaneseq
    %v181 = vshrl.u32 %v180, 7
    %v182 = vsub.s32 0, %v181
    %v183 = vrot.slane %v175, %v182
    %v185 = vmul.f32 %v152, %v183
    %v187 = vlaneseq
    %v188 = vshrl.u32 %v187, 7
    %v189 = vsub.s32 0, %v188
    %v190 = vrot.slane %v178, %v189
    %v192 = vadd.f32 %v185, %v190
    %v193 = vld [vmem:[#allocation7] sm:$0xff]
    %v194 = vld [vmem:[#allocation7 + $0x8] sm:$0xff]
    %v195 = vld [vmem:[#allocation7 + $0x10] sm:$0xff]
    %v196 = vld [vmem:[#allocation7 + $0x18] sm:$0xff]
    %v197 = vld [vmem:[#allocation7 + $0x20] sm:$0xff]
    %v198 = vld [vmem:[#allocation7 + $0x28] sm:$0xff]
    %v199 = vld [vmem:[#allocation7 + $0x30] sm:$0xff]
    %v200 = vld [vmem:[#allocation7 + $0x38] sm:$0xff]
    %v201 = vld [vmem:[%s6] sm:$0x1]
    %v203 = vlaneseq
    %v204 = vshrl.u32 %v203, 7
    %v205 = vsub.s32 0, %v204
    %v206 = vrot.slane %v201, %v205
    %vm208 = vcmask 523264
    %v210 = vsel %vm208, %v192, 0
    %212 = vmatprep.subr.mxu0 0.0
    %213 = vmatpush1.msra.mxu0 %v193
    %214 = vmatprep.subr.mxu0 0.0
    %215 = vmatpush1.msra.mxu0 %v194
    %216 = vmatprep.subr.mxu0 0.0
    %217 = vmatpush1.msra.mxu0 %v195
    %218 = vmatprep.subr.mxu0 0.0
    %219 = vmatpush1.msra.mxu0 %v196
    %220 = vmatprep.subr.mxu0 0.0
    %221 = vmatpush1.msra.mxu0 %v197
    %222 = vmatprep.subr.mxu0 0.0
    %223 = vmatpush1.msra.mxu0 %v198
    %224 = vmatprep.subr.mxu0 0.0
    %225 = vmatpush1.msra.mxu0 %v199
    %226 = vmatprep.subr.mxu0 0.0
    %227 = vmatpush1.msra.mxu0 %v200
    %228 = vmatprep.subr.mxu0 0.0
    %229 = vmatpush1.msra.mxu0 0.0
    %230 = vmatprep.subr.mxu0 0.0
    %231 = vmatpush1.msra.mxu0 0.0
    %232 = vmatprep.subr.mxu0 0.0
    %233 = vmatpush1.msra.mxu0 0.0
    %234 = vmatprep.subr.mxu0 0.0
    %235 = vmatpush1.msra.mxu0 0.0
    %236 = vmatprep.subr.mxu0 0.0
    %237 = vmatpush1.msra.mxu0 0.0
    %238 = vmatprep.subr.mxu0 0.0
    %239 = vmatpush1.msra.mxu0 0.0
    %240 = vmatprep.subr.mxu0 0.0
    %241 = vmatpush1.msra.mxu0 0.0
    %242 = vmatprep.subr.mxu0 0.0
    %243 = vmatpush1.msra.mxu0 0.0
    %244 = vmatprep.subr.mxu0 0.0
    %245 = vmatpush1.msra.mxu0 0.0
    %246 = vmatprep.subr.mxu0 0.0
    %247 = vmatpush1.msra.mxu0 0.0
    %248 = vmatprep.subr.mxu0 0.0
    %249 = vmatpush1.msra.mxu0 0.0
    %250 = vmatprep.subr.mxu0 0.0
    %251 = vmatpush1.msra.mxu0 0.0
    %252 = vmatprep.subr.mxu0 0.0
    %253 = vmatpush1.msra.mxu0 0.0
    %254 = vmatprep.subr.mxu0 0.0
    %255 = vmatpush1.msra.mxu0 0.0
    %256 = vmatprep.subr.mxu0 0.0
    %257 = vmatpush1.msra.mxu0 0.0
    %258 = vmatprep.subr.mxu0 0.0
    %259 = vmatpush1.msra.mxu0 0.0
    %260 = vmatprep.subr.mxu0 0.0
    %261 = vmatpush1.msra.mxu0 0.0
    %262 = vmatprep.subr.mxu0 0.0
    %263 = vmatpush1.msra.mxu0 0.0
    %264 = vmatprep.subr.mxu0 0.0
    %265 = vmatpush1.msra.mxu0 0.0
    %266 = vmatprep.subr.mxu0 0.0
    %267 = vmatpush1.msra.mxu0 0.0
    %268 = vmatprep.subr.mxu0 0.0
    %269 = vmatpush1.msra.mxu0 0.0
    %270 = vmatprep.subr.mxu0 0.0
    %271 = vmatpush1.msra.mxu0 0.0
    %272 = vmatprep.subr.mxu0 0.0
    %273 = vmatpush1.msra.mxu0 0.0
    %274 = vmatprep.subr.mxu0 0.0
    %275 = vmatpush1.msra.mxu0 0.0
    %276 = vmatprep.mubr.f32.mxu0 0.0
    %277 = vmatmul.mubr.f32.gmra.mrb[0].mxu0 %v210
    %v278 = vpop.f32.mrb[0].mxu0
    %v279 = vadd.f32 %v206, %v278
    %v280 = vpop.f32.mrb[0].mxu0
    %281 = vdwg.mxu0
    %282 = vst [vmem:[#allocation8] sm:$0x3f] %v279
    // Predicated region
    $region42: #{tpu_custom_call.1} parent=1 // pred_check
      _
    $region43: #{tpu_custom_call.1} parent=1 // pred_check_branch
      %284 = sbr.rel (0) target = $region45
    $region44: #{tpu_custom_call.1} parent=1 // pred_region
      %s286 = ssub.s32 128, 128
      %287 = vsyncadd [#allocation4], %s286
      %s289 = sshll.u32 [#allocation8], 4
      %s290 = int_to_ptr.vmem [resolvable:$true] %s289
      %292 = dma.vmem_to_hbm [thread:$0]  %s290, 128, %s7, [#allocation4]
    $region45: #{tpu_custom_call.1} parent=1 // pred_fallthru
      _
    // Predicated region
    $region46: #{tpu_custom_call.1} parent=1 // pred_check
      _
    $region47: #{tpu_custom_call.1} parent=1 // pred_check_branch
      %294 = sbr.rel (0) target = $region49
    $region48: #{tpu_custom_call.1} parent=1 // pred_region
      %295 = dma.done [#allocation4], 128
    $region49: #{tpu_custom_call.1} parent=1 // pred_fallthru
      _
    %296 = vsyncpa [#allocation3], 1
    %297 = vsyncpa [#allocation6], 1
    %298 = vsyncpa [#allocation4], 1

</llo_original>
